<compile_context>
chip_gen: v7x
topology: tpu7x:2x2x1
jax: 0.10.0
libtpu: 0.0.40
codegen_flags: <defaults>
</compile_context>

<pallas_src>
import jax
import jax.numpy as jnp
from jax.experimental import pallas as pl
from jax.experimental.pallas import tpu as pltpu


def attentive_pool_kernel(x_ref, u_ref, c_ref, o_ref):
    # x_ref: (TB, S, H)  slab of batch rows (storage dtype, e.g. f32/bf16)
    # u_ref: (1, H)      fused score vector  u = W^T v          (f32)
    # c_ref: (1, 1)      fused score bias    c = b . v          (f32)
    # o_ref: (TB, H)     pooled outputs for this slab
    xf = x_ref[...].astype(jnp.float32)                     # (TB, S, H)
    u = u_ref[...]                                           # (1, H) broadcast

    # scores = tanh(x @ u + c): VPU multiply + XLU lane reduction, tanh on EUP.
    scores = jnp.tanh(jnp.sum(xf * u, axis=-1) + c_ref[...])  # (TB, S)

    # Numerically stable softmax numerator over the sequence axis.
    m = jnp.max(scores, axis=-1, keepdims=True)              # (TB, 1)
    e = jnp.exp(scores - m)                                  # (TB, S)
    denom = jnp.sum(e, axis=-1, keepdims=True)               # (TB, 1)

    # Weighted sum of the ORIGINAL inputs over S, normalized once at the end.
    pooled = jnp.sum(e[:, :, None] * xf, axis=1)             # (TB, H)
    o_ref[...] = (pooled / denom).astype(o_ref.dtype)


def attentive_pooling(inputs, w_proj, b_proj, v_weight, *, block_b=None):
    """inputs: (B, S, H); w_proj: (H, H) PyTorch layout (out, in);
    b_proj: (H,); v_weight: (1, H) PyTorch layout. Returns (B, H)."""
    B, S, H = inputs.shape

    # Fold the linear projection into the score path:
    #   scores = (x @ W^T + b) @ v^T = x @ (W^T v) + (b . v)
    w = jnp.asarray(w_proj, jnp.float32)                  # (H_out, H_in)
    v = jnp.asarray(v_weight, jnp.float32).reshape(-1)    # (H_out,)
    b = jnp.asarray(b_proj, jnp.float32).reshape(-1)      # (H_out,)
    u = (w.T @ v).reshape(1, H)                           # (1, H)
    c = jnp.dot(b, v).reshape(1, 1)                       # (1, 1)

    # Pick a batch-slab size: ~4 MiB of x per block (double-buffered -> ~8 MiB),
    # safe on every generation incl. v7x's 64 MiB VMEM. Keep the output block's
    # sublane dim 8-aligned when it doesn't span the full batch and fits budget.
    if block_b is None:
        budget = 4 * 1024 * 1024
        per_row = S * H * jnp.dtype(inputs.dtype).itemsize
        block_b = max(1, budget // max(per_row, 1))
        if block_b >= B:
            block_b = B
        elif block_b >= 8:
            block_b = (block_b // 8) * 8
    grid_b = pl.cdiv(B, block_b)

    return pl.pallas_call(
        attentive_pool_kernel,
        out_shape=jax.ShapeDtypeStruct((B, H), inputs.dtype),
        grid_spec=pltpu.PrefetchScalarGridSpec(
            num_scalar_prefetch=0,
            grid=(grid_b,),
            in_specs=[
                pl.BlockSpec((block_b, S, H), lambda i: (i, 0, 0)),  # x slab
                pl.BlockSpec((1, H), lambda i: (0, 0)),              # u = W^T v
                pl.BlockSpec((1, 1), lambda i: (0, 0)),              # c = b . v
            ],
            out_specs=pl.BlockSpec((block_b, H), lambda i: (i, 0)),
        ),
        compiler_params=pltpu.CompilerParams(
            dimension_semantics=("parallel",),       # shards batch across TCs (v7x)
            vmem_limit_bytes=32 * 1024 * 1024,       # ample for ~8-9 MiB live
        ),
    )(inputs, u, c)


def attentive_pooling_ref(inputs, w_proj, b_proj, v_weight):
    """Pure-JAX reference mirroring the PyTorch forward exactly."""
    lin = jnp.einsum("bsh,oh->bso", inputs, w_proj) + b_proj          # (B,S,H)
    w = jnp.tanh(jnp.einsum("bsh,oh->bso", lin, v_weight))[..., 0]    # (B,S)
    p = jax.nn.softmax(w, axis=-1)                                    # (B,S)
    return jnp.sum(p[..., None] * inputs, axis=1)                     # (B,H)


if __name__ == "__main__":
    B, S, H = 2, 8, 32  # batch, seq, hidden_size

    key = jax.random.PRNGKey(0)
    k_x, k_w, k_b, k_v = jax.random.split(key, 4)

    x = jax.random.normal(k_x, (B, S, H), jnp.float32)
    # nn.Linear(hidden, hidden): weight (H, H), bias (H,)
    w_proj = jax.random.normal(k_w, (H, H), jnp.float32) * 0.1
    b_proj = jax.random.normal(k_b, (H,), jnp.float32) * 0.1
    # nn.Linear(hidden, 1, bias=False): weight (1, H)
    v_weight = jax.random.normal(k_v, (1, H), jnp.float32) * 0.1

    out = attentive_pooling(x, w_proj, b_proj, v_weight)
    out = jax.block_until_ready(out)

    ref = attentive_pooling_ref(x, w_proj, b_proj, v_weight)
    assert out.shape == (B, H)
    # Fused projection (x @ (W^T v) + b.v) is mathematically identical but
    # rounds slightly differently than the two-step reference.
    assert jnp.allclose(out, ref, atol=1e-4, rtol=1e-4), (
        f"max abs err {jnp.max(jnp.abs(out - ref))}")

    print("KERNEL_OK")
</pallas_src>

<mosaic_0001>
module attributes {stable_mosaic.version = 11 : i64} {
  func.func @attentive_pool_kernel(%arg0: i32, %arg1: memref<2x8x32xf32, #tpu.memory_space<vmem>>, %arg2: memref<1x32xf32, #tpu.memory_space<vmem>>, %arg3: memref<1x1xf32, #tpu.memory_space<vmem>>, %arg4: memref<2x32xf32, #tpu.memory_space<vmem>>) attributes {dimension_semantics = [#tpu.dimension_semantics<parallel>], iteration_bounds = array<i64: 1>, scalar_prefetch = 0 : i64, scratch_operands = 0 : i64, tpu.core_type = #tpu.core_type<tc>, window_params = [{transform_indices = @transform_0, window_bounds = array<i64: 2, 8, 32>}, {pipeline_mode = #tpu.pipeline_mode<synchronous>, transform_indices = @transform_1, window_bounds = array<i64: 1, 32>}, {pipeline_mode = #tpu.pipeline_mode<synchronous>, transform_indices = @transform_2, window_bounds = array<i64: 1, 1>}, {transform_indices = @transform_3, window_bounds = array<i64: 2, 32>}]} {
    %c0 = arith.constant 0 : index
    %c0_0 = arith.constant 0 : index
    %c0_1 = arith.constant 0 : index
    %0 = vector.load %arg1[%c0, %c0_0, %c0_1] : memref<2x8x32xf32, #tpu.memory_space<vmem>>, vector<2x8x32xf32>
    %c0_2 = arith.constant 0 : index
    %c0_3 = arith.constant 0 : index
    %1 = vector.load %arg2[%c0_2, %c0_3] : memref<1x32xf32, #tpu.memory_space<vmem>>, vector<1x32xf32>
    %2 = vector.shape_cast %1 : vector<1x32xf32> to vector<1x1x32xf32>
    %3 = vector.broadcast %2 : vector<1x1x32xf32> to vector<2x8x32xf32>
    %4 = arith.mulf %0, %3 : vector<2x8x32xf32>
    %cst = arith.constant dense<0.000000e+00> : vector<2x8xf32>
    %5 = vector.multi_reduction <add>, %4, %cst [2] : vector<2x8x32xf32> to vector<2x8xf32>
    %c0_4 = arith.constant 0 : index
    %c0_5 = arith.constant 0 : index
    %6 = vector.load %arg3[%c0_4, %c0_5] : memref<1x1xf32, #tpu.memory_space<vmem>>, vector<1x1xf32>
    %7 = vector.broadcast %6 : vector<1x1xf32> to vector<2x8xf32>
    %8 = arith.addf %5, %7 : vector<2x8xf32>
    %9 = math.tanh %8 : vector<2x8xf32>
    %cst_6 = arith.constant dense<0xFF800000> : vector<2xf32>
    %10 = vector.multi_reduction <maximumf>, %9, %cst_6 [1] : vector<2x8xf32> to vector<2xf32>
    %11 = vector.shape_cast %10 : vector<2xf32> to vector<2x1xf32>
    %12 = vector.broadcast %11 : vector<2x1xf32> to vector<2x8xf32>
    %13 = arith.subf %9, %12 : vector<2x8xf32>
    %14 = math.exp %13 : vector<2x8xf32>
    %cst_7 = arith.constant dense<0.000000e+00> : vector<2xf32>
    %15 = vector.multi_reduction <add>, %14, %cst_7 [1] : vector<2x8xf32> to vector<2xf32>
    %16 = vector.shape_cast %15 : vector<2xf32> to vector<2x1xf32>
    %17 = vector.shape_cast %14 : vector<2x8xf32> to vector<2x8x1xf32>
    %18 = vector.broadcast %17 : vector<2x8x1xf32> to vector<2x8x32xf32>
    %19 = arith.mulf %18, %0 : vector<2x8x32xf32>
    %cst_8 = arith.constant dense<0.000000e+00> : vector<2x32xf32>
    %20 = vector.multi_reduction <add>, %19, %cst_8 [1] : vector<2x8x32xf32> to vector<2x32xf32>
    %21 = vector.broadcast %16 : vector<2x1xf32> to vector<2x32xf32>
    %22 = arith.divf %20, %21 : vector<2x32xf32>
    %c0_9 = arith.constant 0 : index
    %c0_10 = arith.constant 0 : index
    %23 = vector.load %arg4[%c0_9, %c0_10] : memref<2x32xf32, #tpu.memory_space<vmem>>, vector<2x32xf32>
    tpu.vector_store %arg4[%c0_9, %c0_10], %22 {strides = array<i32>} : memref<2x32xf32, #tpu.memory_space<vmem>>, vector<2x32xf32>,
    return
  }
  func.func @transform_0(%arg0: i32) -> (i32, i32, i32) {
    %c0_i32 = arith.constant 0 : i32
    %c0_i32_0 = arith.constant 0 : i32
    %c0_i32_1 = arith.constant 0 : i32
    return %arg0, %c0_i32, %c0_i32_0 : i32, i32, i32
  }
  func.func @transform_1(%arg0: i32) -> (i32, i32) {
    %c0_i32 = arith.constant 0 : i32
    %c0_i32_0 = arith.constant 0 : i32
    %c0_i32_1 = arith.constant 0 : i32
    return %c0_i32, %c0_i32_0 : i32, i32
  }
  func.func @transform_2(%arg0: i32) -> (i32, i32) {
    %c0_i32 = arith.constant 0 : i32
    %c0_i32_0 = arith.constant 0 : i32
    %c0_i32_1 = arith.constant 0 : i32
    return %c0_i32, %c0_i32_0 : i32, i32
  }
  func.func @transform_3(%arg0: i32) -> (i32, i32) {
    %c0_i32 = arith.constant 0 : i32
    %c0_i32_0 = arith.constant 0 : i32
    return %arg0, %c0_i32 : i32, i32
  }
}

</mosaic_0001>

<llo_original>
// kernel: tpu_custom_call.1
$region0: #{tpu_custom_call.1}
  #allocation0 [shape = 'u32[]', space=smem, size = 0x4, offset = 0x4, fixed_abs, tag = 'smem constant byte address 0x4 - core index']
  #allocation1 [shape = 'u32[144,128]{1,0:T(1,128)}', space=vmem, size = 0x12000, scoped, tag = 'internal scratch']
  #allocation2 [shape = 'f32[1,1]{1,0:T(1,128)S(1)}', space=vmem, size = 0x200, scoped, tag = 'scoped memory for tpu_custom_call.1']
  %s0 = inlined_call_operand.hbm [shape: f32[2,8,32], index: 0, kind: input, shape index: {}]
  %s1 = inlined_call_operand.vmem [shape: f32[1,32], index: 1, kind: input, shape index: {}]
  %s2 = inlined_call_operand.<no memory space> [shape: f32[1,1], index: 2, kind: input, shape index: {}]
  %s3 = inlined_call_operand.hbm [shape: f32[2,32], index: 3, kind: output, shape index: {}]
  %s4 = sld [smem:[#allocation0]]
  $region26: #{tpu_custom_call.1} parent=0
    _
  %s6 = ssub.s32 1, %s4
  %s7 = scalar_select 0, %s6, %s4
  %v8 = vstv %s2
  %9 = vst [vmem:[#allocation2] sm:$0x1] %v8
  $region1: #{tpu_custom_call.1} parent=0
    #allocation3 [shape = 'u8[8192]{0}', space=vmem, size = 0x2000, scoped, tag = 'input window, operand 0, single buffered']
    #allocation4 [shape = 's32[1]{0}', space=sflag, size = 0x4, scoped, tag = 'scoped memory for tpu_custom_call.1']
    #allocation5 [shape = 's32[1]{0}', space=sflag, size = 0x4, scoped, tag = 'scoped memory for tpu_custom_call.1']
    #allocation6 [shape = 'u8[1024]{0}', space=vmem, size = 0x400, scoped, tag = 'output window, operand 0, single buffered']
    %10 = vsyncpa [#allocation4], 0
    %11 = vsyncpa [#allocation5], 0
    // Predicated region
    $region2: #{tpu_custom_call.1} parent=1 // pred_check
      _
    $region3: #{tpu_custom_call.1} parent=1 // pred_check_branch
      %13 = sbr.rel (0) target = $region5
    $region4: #{tpu_custom_call.1} parent=1 // pred_region
      %s15 = ssub.s32 256, 256
      %16 = vsyncadd [#allocation4], %s15
      %s17 = sshll.u32 [#allocation3], 4
      %s18 = int_to_ptr.vmem [resolvable:$true] %s17
      %23 = dma.hbm_to_vmem [thread:$0]  %s0, 256, %s18, [#allocation4], 128, 128, 8
    $region5: #{tpu_custom_call.1} parent=1 // pred_fallthru
      _
    // Predicated region
    $region6: #{tpu_custom_call.1} parent=1 // pred_check
      _
    $region7: #{tpu_custom_call.1} parent=1 // pred_check_branch
      %25 = sbr.rel (0) target = $region9
    $region8: #{tpu_custom_call.1} parent=1 // pred_region
      _
    $region9: #{tpu_custom_call.1} parent=1 // pred_fallthru
      _
    // Predicated region
    $region10: #{tpu_custom_call.1} parent=1 // pred_check
      _
    $region11: #{tpu_custom_call.1} parent=1 // pred_check_branch
      %27 = sbr.rel (0) target = $region13
    $region12: #{tpu_custom_call.1} parent=1 // pred_region
      _
    $region13: #{tpu_custom_call.1} parent=1 // pred_fallthru
      _
    // Predicated region
    $region14: #{tpu_custom_call.1} parent=1 // pred_check
      _
    $region15: #{tpu_custom_call.1} parent=1 // pred_check_branch
      %29 = sbr.rel (0) target = $region17
    $region16: #{tpu_custom_call.1} parent=1 // pred_region
      %30 = dma.done [#allocation4], 256
    $region17: #{tpu_custom_call.1} parent=1 // pred_fallthru
      _
    %v31 = vld [vmem:[#allocation3] sm:$0xff]
    %v32 = vld [vmem:[#allocation3 + $0x8] sm:$0xff]
    %v33 = vld [vmem:[%s1] sm:$0x1]
    %v35 = vlaneseq
    %v36 = vshrl.u32 %v35, 7
    %v37 = vsub.s32 0, %v36
    %v38 = vrot.slane %v33, %v37
    %v40 = vmul.f32 %v31, %v38
    %v41 = vmul.f32 %v32, %v38
    %vm42 = vcmask 261120
    %v43 = vsel %vm42, %v40, 0.0
    %44 = vadd.xlane.f32.xlu0 %v43
    %v45 = vpop.xlane.xlu0 %44
    %v46 = vsel %vm42, %v41, 0.0
    %47 = vadd.xlane.f32.xlu0 %v46
    %v48 = vpop.xlane.xlu0 %47
    %v49 = vld [vmem:[#allocation2] sm:$0x1]
    %v51 = vlaneseq
    %v52 = vshrl.u32 %v51, 7
    %v53 = vsub.s32 0, %v52
    %v54 = vrot.slane %v49, %v53
    %55 = vset.pattern.permute.xlu0 0
    %56 = vperm.xlu0 %55, %v54
    %v57 = vpop.permute.xlu0 %56
    %v59 = vadd.f32 %v45, %v57
    %v60 = vadd.f32 %v48, %v57
    %v61 = vtanh.pop %v59
    %v62 = vtanh.pop %v60
    %v65 = vlaneseq
    %v66 = vand.u32 %v65, 127
    %v67 = vlaneseq
    %v68 = vshrl.u32 %v67, 7
    %v69 = vsub.s32 %v66, %v68
    %v70 = vrot.slane %v61, %v69
    %v71 = vlaneseq
    %v72 = vshrl.u32 %v71, 7
    %v73 = vsub.s32 %v66, %v72
    %v74 = vrot.slane %v62, %v73
    %vm75 = vcmask 1041409
    %v76 = vsel %vm75, %v74, %v70
    %vm78 = vcmask 58368
    %v79 = vsel %vm78, %v76, -inf
    %80 = vmax.xlane.f32.xlu0 %v79
    %v81 = vpop.xlane.xlu0 %80
    %v83 = vlaneseq
    %v84 = vshrl.u32 %v83, 7
    %v85 = vsub.s32 0, %v84
    %v86 = vrot.slane %v81, %v85
    %v87 = vlaneseq
    %v88 = vshrl.u32 %v87, 7
    %v89 = vsub.s32 1, %v88
    %v90 = vrot.slane %v81, %v89
    %v93 = vsub.f32 %v61, %v86
    %v94 = vsub.f32 %v62, %v90
    %v95 = vmul.f32 %v93, 1.442695
    %v96 = vpow.pop %v95
    %v97 = vmul.f32 %v94, 1.442695
    %v98 = vpow.pop %v97
    %101 = vset.pattern.permute.xlu0 0
    %102 = vperm.xlu0 %101, %v96
    %v103 = vpop.permute.xlu0 %102
    %104 = vset.pattern.permute.xlu0 0
    %105 = vperm.xlu0 %104, %v98
    %v106 = vpop.permute.xlu0 %105
    %v107 = vlaneseq
    %v108 = vshrl.u32 %v107, 7
    %v109 = vsub.s32 %v66, %v108
    %v110 = vrot.slane %v103, %v109
    %v111 = vlaneseq
    %v112 = vshrl.u32 %v111, 7
    %v113 = vsub.s32 %v66, %v112
    %v114 = vrot.slane %v106, %v113
    %v115 = vsel %vm75, %v114, %v110
    %v117 = vsel %vm78, %v115, 0.0
    %118 = vadd.xlane.f32.xlu0 %v117
    %v119 = vpop.xlane.xlu0 %118
    %v122 = vmul.f32 %v103, %v31
    %v123 = vmul.f32 %v106, %v32
    %v124 = vsel %vm42, %v122, 0.0
    %v125 = vrot.slane %v124, 4
    %v126 = vadd.f32 %v124, %v125
    %v127 = vrot.slane %v126, 2
    %v128 = vadd.f32 %v126, %v127
    %v129 = vrot.slane %v128, 1
    %v130 = vadd.f32 %v128, %v129
    %v131 = vsel %vm42, %v123, 0.0
    %v132 = vrot.slane %v131, 4
    %v133 = vadd.f32 %v131, %v132
    %v134 = vrot.slane %v133, 2
    %v135 = vadd.f32 %v133, %v134
    %v136 = vrot.slane %v135, 1
    %v137 = vadd.f32 %v135, %v136
    %v139 = vrot.slane %v119, 1
    %v142 = vrcp.pop %v119
    %v143 = vmul.f32 %v130, %v142
    %v144 = vrcp.pop %v139
    %v145 = vmul.f32 %v137, %v144
    %v148 = vrot.slane %v145, 7
    %v149 = vsel %vm75, %v148, %v143
    %vm151 = vcmask 254976
    %152 = vst.msk [vmem:[#allocation6] sm:$0x3] %vm151, %v149
    // Predicated region
    $region18: #{tpu_custom_call.1} parent=1 // pred_check
      _
    $region19: #{tpu_custom_call.1} parent=1 // pred_check_branch
      %154 = sbr.rel (0) target = $region21
    $region20: #{tpu_custom_call.1} parent=1 // pred_region
      %s156 = ssub.s32 32, 32
      %157 = vsyncadd [#allocation5], %s156
      %s159 = sshll.u32 [#allocation6], 4
      %s160 = int_to_ptr.vmem [resolvable:$true] %s159
      %162 = dma.vmem_to_hbm [thread:$0]  %s160, 32, %s3, [#allocation5]
    $region21: #{tpu_custom_call.1} parent=1 // pred_fallthru
      _
    // Predicated region
    $region22: #{tpu_custom_call.1} parent=1 // pred_check
      _
    $region23: #{tpu_custom_call.1} parent=1 // pred_check_branch
      %164 = sbr.rel (0) target = $region25
    $region24: #{tpu_custom_call.1} parent=1 // pred_region
      %165 = dma.done [#allocation5], 32
    $region25: #{tpu_custom_call.1} parent=1 // pred_fallthru
      _
    %166 = vsyncpa [#allocation4], 1
    %167 = vsyncpa [#allocation5], 1

</llo_original>
